<compile_context>
chip_gen: v7x
topology: tpu7x:2x2x1
jax: 0.10.0
libtpu: 0.0.40
codegen_flags: <defaults>
</compile_context>

<pallas_src>
import jax
import jax.numpy as jnp
from jax.experimental import pallas as pl
from jax.experimental.pallas import tpu as pltpu


_STRIP = 8        # output rows (sublanes) produced per inner step
_D_CHUNK = 128    # lane-aligned feature chunk streamed through tanh


def _kg_score_kernel(head_ref, dept_ref, w_ref, b_ref, out_ref):
    """Computes one (TI, TJ) output tile.

    head_ref : (1, TI, D)  VMEM   rows i on sublanes, features D on lanes
    dept_ref : (1, D, TJ)  VMEM   features D on sublanes, cols j on lanes
    w_ref    : (D,)        SMEM   Linear(D -> 1) weight
    b_ref    : (1,)        SMEM   Linear bias
    out_ref  : (1, TI, TJ) VMEM   lane-dense output tile
    """
    TI = head_ref.shape[1]
    D = head_ref.shape[2]
    TJ = out_ref.shape[2]

    bias = b_ref[0]
    n_full = D // _D_CHUNK
    rem = D - n_full * _D_CHUNK

    def accumulate_chunk(r0, d0, dc, acc):
        # Stream dc features: per feature only an (8, TJ) tanh slab is live.
        h_chunk = head_ref[0, pl.ds(r0, _STRIP), pl.ds(d0, dc)].astype(jnp.float32)
        for dd in range(dc):                                   # static unroll
            d_idx = d0 + dd
            h_col = h_chunk[:, dd:dd + 1]                      # (8, 1)  static lane slice
            dep_row = dept_ref[0, pl.ds(d_idx, 1), :].astype(jnp.float32)  # (1, TJ)
            t = jnp.tanh(h_col + dep_row)                      # (8, TJ) EUP
            acc = acc + w_ref[d_idx] * t                       # VPU FMA into resident acc
        return acc

    def strip_body(r0):
        acc = jnp.zeros((_STRIP, TJ), jnp.float32)
        if n_full == 1:
            acc = accumulate_chunk(r0, 0, _D_CHUNK, acc)
        elif n_full > 1:
            def chunk_loop(c, a):
                d0 = pl.multiple_of(c * _D_CHUNK, _D_CHUNK)    # 128-aligned lane offset
                return accumulate_chunk(r0, d0, _D_CHUNK, a)
            acc = jax.lax.fori_loop(0, n_full, chunk_loop, acc)
        if rem:
            acc = accumulate_chunk(r0, n_full * _D_CHUNK, rem, acc)
        out_ref[0, pl.ds(r0, _STRIP), :] = (acc + bias).astype(out_ref.dtype)

    n_strips = TI // _STRIP
    if n_strips == 1:
        strip_body(0)
    else:
        # Strip loop deliberately NOT unrolled (keeps live ranges bounded).
        def loop_body(s, carry):
            strip_body(pl.multiple_of(s * _STRIP, _STRIP))
            return carry
        jax.lax.fori_loop(0, n_strips, loop_body, 0)


def _round_up(x, m):
    return (x + m - 1) // m * m


def _pick_tile(size, candidates):
    for t in candidates:
        if t <= size and size % t == 0:
            return t
    return size


def kg_score(input_head, input_dep, weight, bias, *, tile_i=None, tile_j=None):
    """input_head, input_dep: (B, L, D); weight: (1, D); bias: (1,) -> (B, L, L, 1)."""
    B, L, D = input_head.shape
    out_dtype = input_head.dtype

    # Pad i to a sublane multiple and j to a lane multiple so every output
    # store is an unmasked, lane-dense vst; padded rows/cols are sliced off.
    Li = _round_up(L, _STRIP)
    Lj = _round_up(L, 128)

    TI = tile_i if tile_i is not None else _pick_tile(Li, (128, 64, 32, 16, 8))
    TJ = tile_j if tile_j is not None else _pick_tile(Lj, (256, 128))
    if TI % _STRIP or Li % TI:
        raise ValueError(f"tile_i={TI} must be a multiple of 8 and divide padded L={Li}")
    if TJ % 128 or Lj % TJ:
        raise ValueError(f"tile_j={TJ} must be a multiple of 128 and divide padded L={Lj}")

    head = input_head
    if Li != L:
        head = jnp.pad(head, ((0, 0), (0, Li - L), (0, 0)))
    dep_t = jnp.swapaxes(input_dep, 1, 2)                     # (B, D, L): j on lanes
    if Lj != L:
        dep_t = jnp.pad(dep_t, ((0, 0), (0, 0), (0, Lj - L)))

    w_flat = jnp.asarray(weight, jnp.float32).reshape(D)
    bias1 = jnp.asarray(bias, jnp.float32).reshape(1)

    # Per-step working set (double-buffered by the pipeline), f32.
    step_bytes = 2 * 4 * (TI * D + D * TJ + TI * TJ) + (1 << 20)
    vmem_limit = int(min(64 * 1024 * 1024, max(32 * 1024 * 1024, 2 * step_bytes)))

    out = pl.pallas_call(
        _kg_score_kernel,
        out_shape=jax.ShapeDtypeStruct((B, Li, Lj), out_dtype),
        grid_spec=pltpu.PrefetchScalarGridSpec(
            num_scalar_prefetch=0,
            grid=(B, Li // TI, Lj // TJ),
            in_specs=[
                pl.BlockSpec((1, TI, D), lambda b, i, j: (b, i, 0)),   # head
                pl.BlockSpec((1, D, TJ), lambda b, i, j: (b, 0, j)),   # dep^T
                pl.BlockSpec(memory_space=pltpu.MemorySpace.SMEM),     # weight
                pl.BlockSpec(memory_space=pltpu.MemorySpace.SMEM),     # bias
            ],
            out_specs=pl.BlockSpec((1, TI, TJ), lambda b, i, j: (b, i, j)),
        ),
        compiler_params=pltpu.CompilerParams(
            dimension_semantics=("parallel", "parallel", "parallel"),
            vmem_limit_bytes=vmem_limit,
        ),
    )(head, dep_t, w_flat, bias1)

    return out[:, :L, :L, None]                               # (B, L, L, 1)


def kg_score_ref(input_head, input_dep, weight, bias):
    # Pure-JAX reference mirroring the PyTorch module.
    combined = input_head[:, :, None, :] + input_dep[:, None, :, :]
    return jnp.tanh(combined) @ weight.reshape(-1, 1) + bias


if __name__ == "__main__":
    B, L, D = 2, 8, 32  # batch, seq len, hidden_feats

    key = jax.random.PRNGKey(0)
    k_head, k_dep, k_w, k_b = jax.random.split(key, 4)

    input_head = jax.random.normal(k_head, (B, L, D), dtype=jnp.float32)
    input_dep = jax.random.normal(k_dep, (B, L, D), dtype=jnp.float32)

    # nn.Linear(hidden_feats, 1): weight (1, D), bias (1,) — deterministic init.
    bound = 1.0 / jnp.sqrt(D)
    weight = jax.random.uniform(k_w, (1, D), minval=-bound, maxval=bound,
                                dtype=jnp.float32)
    bias = jax.random.uniform(k_b, (1,), minval=-bound, maxval=bound,
                              dtype=jnp.float32)

    out = kg_score(input_head, input_dep, weight, bias)
    out = jax.block_until_ready(out)

    ref = kg_score_ref(input_head, input_dep, weight, bias)
    assert out.shape == (B, L, L, 1), out.shape
    assert jnp.allclose(out, ref, atol=1e-5, rtol=1e-5), "mismatch vs reference"

    print("KERNEL_OK")
</pallas_src>

<mosaic_0001>
module attributes {stable_mosaic.version = 11 : i64} {
  func.func @_kg_score_kernel(%arg0: i32, %arg1: i32, %arg2: i32, %arg3: memref<1x8x32xf32, #tpu.memory_space<vmem>>, %arg4: memref<1x32x128xf32, #tpu.memory_space<vmem>>, %arg5: memref<32xf32, #tpu.memory_space<smem>>, %arg6: memref<1xf32, #tpu.memory_space<smem>>, %arg7: memref<1x8x128xf32, #tpu.memory_space<vmem>>) attributes {dimension_semantics = [#tpu.dimension_semantics<parallel>, #tpu.dimension_semantics<parallel>, #tpu.dimension_semantics<parallel>], iteration_bounds = array<i64: 2, 1, 1>, scalar_prefetch = 0 : i64, scratch_operands = 0 : i64, tpu.core_type = #tpu.core_type<tc>, window_params = [{transform_indices = @transform_0, window_bounds = array<i64: 1, 8, 32>}, {transform_indices = @transform_1, window_bounds = array<i64: 1, 32, 128>}, {transform_indices = @transform_2, window_bounds = array<i64: 32>}, {transform_indices = @transform_3, window_bounds = array<i64: 1>}, {transform_indices = @transform_4, window_bounds = array<i64: 1, 8, 128>}]} {
    %c0 = arith.constant 0 : index
    %0 = memref.load %arg6[%c0] : memref<1xf32, #tpu.memory_space<smem>>
    %cst = arith.constant 0.000000e+00 : f32
    %1 = vector.broadcast %cst : f32 to vector<8x128xf32>
    %c0_0 = arith.constant 0 : index
    %c0_1 = arith.constant 0 : index
    %c0_2 = arith.constant 0 : index
    %2 = vector.load %arg3[%c0_0, %c0_1, %c0_2] : memref<1x8x32xf32, #tpu.memory_space<vmem>>, vector<1x8x32xf32>
    %3 = vector.shape_cast %2 : vector<1x8x32xf32> to vector<8x32xf32>
    %4 = vector.extract_strided_slice %3 {offsets = [0, 0], sizes = [8, 1], strides = [1, 1]} : vector<8x32xf32> to vector<8x1xf32>
    %c0_3 = arith.constant 0 : index
    %c0_4 = arith.constant 0 : index
    %c0_5 = arith.constant 0 : index
    %5 = vector.load %arg4[%c0_3, %c0_4, %c0_5] : memref<1x32x128xf32, #tpu.memory_space<vmem>>, vector<1x1x128xf32>
    %6 = vector.shape_cast %5 : vector<1x1x128xf32> to vector<1x128xf32>
    %7 = vector.broadcast %4 : vector<8x1xf32> to vector<8x128xf32>
    %8 = vector.broadcast %6 : vector<1x128xf32> to vector<8x128xf32>
    %9 = arith.addf %7, %8 : vector<8x128xf32>
    %10 = math.tanh %9 : vector<8x128xf32>
    %c0_6 = arith.constant 0 : index
    %11 = memref.load %arg5[%c0_6] : memref<32xf32, #tpu.memory_space<smem>>
    %12 = vector.broadcast %11 : f32 to vector<8x128xf32>
    %13 = arith.mulf %12, %10 : vector<8x128xf32>
    %14 = arith.addf %1, %13 : vector<8x128xf32>
    %15 = vector.extract_strided_slice %3 {offsets = [0, 1], sizes = [8, 1], strides = [1, 1]} : vector<8x32xf32> to vector<8x1xf32>
    %c0_7 = arith.constant 0 : index
    %c1 = arith.constant 1 : index
    %c0_8 = arith.constant 0 : index
    %16 = vector.load %arg4[%c0_7, %c1, %c0_8] : memref<1x32x128xf32, #tpu.memory_space<vmem>>, vector<1x1x128xf32>
    %17 = vector.shape_cast %16 : vector<1x1x128xf32> to vector<1x128xf32>
    %18 = vector.broadcast %15 : vector<8x1xf32> to vector<8x128xf32>
    %19 = vector.broadcast %17 : vector<1x128xf32> to vector<8x128xf32>
    %20 = arith.addf %18, %19 : vector<8x128xf32>
    %21 = math.tanh %20 : vector<8x128xf32>
    %c1_9 = arith.constant 1 : index
    %22 = memref.load %arg5[%c1_9] : memref<32xf32, #tpu.memory_space<smem>>
    %23 = vector.broadcast %22 : f32 to vector<8x128xf32>
    %24 = arith.mulf %23, %21 : vector<8x128xf32>
    %25 = arith.addf %14, %24 : vector<8x128xf32>
    %26 = vector.extract_strided_slice %3 {offsets = [0, 2], sizes = [8, 1], strides = [1, 1]} : vector<8x32xf32> to vector<8x1xf32>
    %c0_10 = arith.constant 0 : index
    %c2 = arith.constant 2 : index
    %c0_11 = arith.constant 0 : index
    %27 = vector.load %arg4[%c0_10, %c2, %c0_11] : memref<1x32x128xf32, #tpu.memory_space<vmem>>, vector<1x1x128xf32>
    %28 = vector.shape_cast %27 : vector<1x1x128xf32> to vector<1x128xf32>
    %29 = vector.broadcast %26 : vector<8x1xf32> to vector<8x128xf32>
    %30 = vector.broadcast %28 : vector<1x128xf32> to vector<8x128xf32>
    %31 = arith.addf %29, %30 : vector<8x128xf32>
    %32 = math.tanh %31 : vector<8x128xf32>
    %c2_12 = arith.constant 2 : index
    %33 = memref.load %arg5[%c2_12] : memref<32xf32, #tpu.memory_space<smem>>
    %34 = vector.broadcast %33 : f32 to vector<8x128xf32>
    %35 = arith.mulf %34, %32 : vector<8x128xf32>
    %36 = arith.addf %25, %35 : vector<8x128xf32>
    %37 = vector.extract_strided_slice %3 {offsets = [0, 3], sizes = [8, 1], strides = [1, 1]} : vector<8x32xf32> to vector<8x1xf32>
    %c0_13 = arith.constant 0 : index
    %c3 = arith.constant 3 : index
    %c0_14 = arith.constant 0 : index
    %38 = vector.load %arg4[%c0_13, %c3, %c0_14] : memref<1x32x128xf32, #tpu.memory_space<vmem>>, vector<1x1x128xf32>
    %39 = vector.shape_cast %38 : vector<1x1x128xf32> to vector<1x128xf32>
    %40 = vector.broadcast %37 : vector<8x1xf32> to vector<8x128xf32>
    %41 = vector.broadcast %39 : vector<1x128xf32> to vector<8x128xf32>
    %42 = arith.addf %40, %41 : vector<8x128xf32>
    %43 = math.tanh %42 : vector<8x128xf32>
    %c3_15 = arith.constant 3 : index
    %44 = memref.load %arg5[%c3_15] : memref<32xf32, #tpu.memory_space<smem>>
    %45 = vector.broadcast %44 : f32 to vector<8x128xf32>
    %46 = arith.mulf %45, %43 : vector<8x128xf32>
    %47 = arith.addf %36, %46 : vector<8x128xf32>
    %48 = vector.extract_strided_slice %3 {offsets = [0, 4], sizes = [8, 1], strides = [1, 1]} : vector<8x32xf32> to vector<8x1xf32>
    %c0_16 = arith.constant 0 : index
    %c4 = arith.constant 4 : index
    %c0_17 = arith.constant 0 : index
    %49 = vector.load %arg4[%c0_16, %c4, %c0_17] : memref<1x32x128xf32, #tpu.memory_space<vmem>>, vector<1x1x128xf32>
    %50 = vector.shape_cast %49 : vector<1x1x128xf32> to vector<1x128xf32>
    %51 = vector.broadcast %48 : vector<8x1xf32> to vector<8x128xf32>
    %52 = vector.broadcast %50 : vector<1x128xf32> to vector<8x128xf32>
    %53 = arith.addf %51, %52 : vector<8x128xf32>
    %54 = math.tanh %53 : vector<8x128xf32>
    %c4_18 = arith.constant 4 : index
    %55 = memref.load %arg5[%c4_18] : memref<32xf32, #tpu.memory_space<smem>>
    %56 = vector.broadcast %55 : f32 to vector<8x128xf32>
    %57 = arith.mulf %56, %54 : vector<8x128xf32>
    %58 = arith.addf %47, %57 : vector<8x128xf32>
    %59 = vector.extract_strided_slice %3 {offsets = [0, 5], sizes = [8, 1], strides = [1, 1]} : vector<8x32xf32> to vector<8x1xf32>
    %c0_19 = arith.constant 0 : index
    %c5 = arith.constant 5 : index
    %c0_20 = arith.constant 0 : index
    %60 = vector.load %arg4[%c0_19, %c5, %c0_20] : memref<1x32x128xf32, #tpu.memory_space<vmem>>, vector<1x1x128xf32>
    %61 = vector.shape_cast %60 : vector<1x1x128xf32> to vector<1x128xf32>
    %62 = vector.broadcast %59 : vector<8x1xf32> to vector<8x128xf32>
    %63 = vector.broadcast %61 : vector<1x128xf32> to vector<8x128xf32>
    %64 = arith.addf %62, %63 : vector<8x128xf32>
    %65 = math.tanh %64 : vector<8x128xf32>
    %c5_21 = arith.constant 5 : index
    %66 = memref.load %arg5[%c5_21] : memref<32xf32, #tpu.memory_space<smem>>
    %67 = vector.broadcast %66 : f32 to vector<8x128xf32>
    %68 = arith.mulf %67, %65 : vector<8x128xf32>
    %69 = arith.addf %58, %68 : vector<8x128xf32>
    %70 = vector.extract_strided_slice %3 {offsets = [0, 6], sizes = [8, 1], strides = [1, 1]} : vector<8x32xf32> to vector<8x1xf32>
    %c0_22 = arith.constant 0 : index
    %c6 = arith.constant 6 : index
    %c0_23 = arith.constant 0 : index
    %71 = vector.load %arg4[%c0_22, %c6, %c0_23] : memref<1x32x128xf32, #tpu.memory_space<vmem>>, vector<1x1x128xf32>
    %72 = vector.shape_cast %71 : vector<1x1x128xf32> to vector<1x128xf32>
    %73 = vector.broadcast %70 : vector<8x1xf32> to vector<8x128xf32>
    %74 = vector.broadcast %72 : vector<1x128xf32> to vector<8x128xf32>
    %75 = arith.addf %73, %74 : vector<8x128xf32>
    %76 = math.tanh %75 : vector<8x128xf32>
    %c6_24 = arith.constant 6 : index
    %77 = memref.load %arg5[%c6_24] : memref<32xf32, #tpu.memory_space<smem>>
    %78 = vector.broadcast %77 : f32 to vector<8x128xf32>
    %79 = arith.mulf %78, %76 : vector<8x128xf32>
    %80 = arith.addf %69, %79 : vector<8x128xf32>
    %81 = vector.extract_strided_slice %3 {offsets = [0, 7], sizes = [8, 1], strides = [1, 1]} : vector<8x32xf32> to vector<8x1xf32>
    %c0_25 = arith.constant 0 : index
    %c7 = arith.constant 7 : index
    %c0_26 = arith.constant 0 : index
    %82 = vector.load %arg4[%c0_25, %c7, %c0_26] : memref<1x32x128xf32, #tpu.memory_space<vmem>>, vector<1x1x128xf32>
    %83 = vector.shape_cast %82 : vector<1x1x128xf32> to vector<1x128xf32>
    %84 = vector.broadcast %81 : vector<8x1xf32> to vector<8x128xf32>
    %85 = vector.broadcast %83 : vector<1x128xf32> to vector<8x128xf32>
    %86 = arith.addf %84, %85 : vector<8x128xf32>
    %87 = math.tanh %86 : vector<8x128xf32>
    %c7_27 = arith.constant 7 : index
    %88 = memref.load %arg5[%c7_27] : memref<32xf32, #tpu.memory_space<smem>>
    %89 = vector.broadcast %88 : f32 to vector<8x128xf32>
    %90 = arith.mulf %89, %87 : vector<8x128xf32>
    %91 = arith.addf %80, %90 : vector<8x128xf32>
    %92 = vector.extract_strided_slice %3 {offsets = [0, 8], sizes = [8, 1], strides = [1, 1]} : vector<8x32xf32> to vector<8x1xf32>
    %c0_28 = arith.constant 0 : index
    %c8 = arith.constant 8 : index
    %c0_29 = arith.constant 0 : index
    %93 = vector.load %arg4[%c0_28, %c8, %c0_29] : memref<1x32x128xf32, #tpu.memory_space<vmem>>, vector<1x1x128xf32>
    %94 = vector.shape_cast %93 : vector<1x1x128xf32> to vector<1x128xf32>
    %95 = vector.broadcast %92 : vector<8x1xf32> to vector<8x128xf32>
    %96 = vector.broadcast %94 : vector<1x128xf32> to vector<8x128xf32>
    %97 = arith.addf %95, %96 : vector<8x128xf32>
    %98 = math.tanh %97 : vector<8x128xf32>
    %c8_30 = arith.constant 8 : index
    %99 = memref.load %arg5[%c8_30] : memref<32xf32, #tpu.memory_space<smem>>
    %100 = vector.broadcast %99 : f32 to vector<8x128xf32>
    %101 = arith.mulf %100, %98 : vector<8x128xf32>
    %102 = arith.addf %91, %101 : vector<8x128xf32>
    %103 = vector.extract_strided_slice %3 {offsets = [0, 9], sizes = [8, 1], strides = [1, 1]} : vector<8x32xf32> to vector<8x1xf32>
    %c0_31 = arith.constant 0 : index
    %c9 = arith.constant 9 : index
    %c0_32 = arith.constant 0 : index
    %104 = vector.load %arg4[%c0_31, %c9, %c0_32] : memref<1x32x128xf32, #tpu.memory_space<vmem>>, vector<1x1x128xf32>
    %105 = vector.shape_cast %104 : vector<1x1x128xf32> to vector<1x128xf32>
    %106 = vector.broadcast %103 : vector<8x1xf32> to vector<8x128xf32>
    %107 = vector.broadcast %105 : vector<1x128xf32> to vector<8x128xf32>
    %108 = arith.addf %106, %107 : vector<8x128xf32>
    %109 = math.tanh %108 : vector<8x128xf32>
    %c9_33 = arith.constant 9 : index
    %110 = memref.load %arg5[%c9_33] : memref<32xf32, #tpu.memory_space<smem>>
    %111 = vector.broadcast %110 : f32 to vector<8x128xf32>
    %112 = arith.mulf %111, %109 : vector<8x128xf32>
    %113 = arith.addf %102, %112 : vector<8x128xf32>
    %114 = vector.extract_strided_slice %3 {offsets = [0, 10], sizes = [8, 1], strides = [1, 1]} : vector<8x32xf32> to vector<8x1xf32>
    %c0_34 = arith.constant 0 : index
    %c10 = arith.constant 10 : index
    %c0_35 = arith.constant 0 : index
    %115 = vector.load %arg4[%c0_34, %c10, %c0_35] : memref<1x32x128xf32, #tpu.memory_space<vmem>>, vector<1x1x128xf32>
    %116 = vector.shape_cast %115 : vector<1x1x128xf32> to vector<1x128xf32>
    %117 = vector.broadcast %114 : vector<8x1xf32> to vector<8x128xf32>
    %118 = vector.broadcast %116 : vector<1x128xf32> to vector<8x128xf32>
    %119 = arith.addf %117, %118 : vector<8x128xf32>
    %120 = math.tanh %119 : vector<8x128xf32>
    %c10_36 = arith.constant 10 : index
    %121 = memref.load %arg5[%c10_36] : memref<32xf32, #tpu.memory_space<smem>>
    %122 = vector.broadcast %121 : f32 to vector<8x128xf32>
    %123 = arith.mulf %122, %120 : vector<8x128xf32>
    %124 = arith.addf %113, %123 : vector<8x128xf32>
    %125 = vector.extract_strided_slice %3 {offsets = [0, 11], sizes = [8, 1], strides = [1, 1]} : vector<8x32xf32> to vector<8x1xf32>
    %c0_37 = arith.constant 0 : index
    %c11 = arith.constant 11 : index
    %c0_38 = arith.constant 0 : index
    %126 = vector.load %arg4[%c0_37, %c11, %c0_38] : memref<1x32x128xf32, #tpu.memory_space<vmem>>, vector<1x1x128xf32>
    %127 = vector.shape_cast %126 : vector<1x1x128xf32> to vector<1x128xf32>
    %128 = vector.broadcast %125 : vector<8x1xf32> to vector<8x128xf32>
    %129 = vector.broadcast %127 : vector<1x128xf32> to vector<8x128xf32>
    %130 = arith.addf %128, %129 : vector<8x128xf32>
    %131 = math.tanh %130 : vector<8x128xf32>
    %c11_39 = arith.constant 11 : index
    %132 = memref.load %arg5[%c11_39] : memref<32xf32, #tpu.memory_space<smem>>
    %133 = vector.broadcast %132 : f32 to vector<8x128xf32>
    %134 = arith.mulf %133, %131 : vector<8x128xf32>
    %135 = arith.addf %124, %134 : vector<8x128xf32>
    %136 = vector.extract_strided_slice %3 {offsets = [0, 12], sizes = [8, 1], strides = [1, 1]} : vector<8x32xf32> to vector<8x1xf32>
    %c0_40 = arith.constant 0 : index
    %c12 = arith.constant 12 : index
    %c0_41 = arith.constant 0 : index
    %137 = vector.load %arg4[%c0_40, %c12, %c0_41] : memref<1x32x128xf32, #tpu.memory_space<vmem>>, vector<1x1x128xf32>
    %138 = vector.shape_cast %137 : vector<1x1x128xf32> to vector<1x128xf32>
    %139 = vector.broadcast %136 : vector<8x1xf32> to vector<8x128xf32>
    %140 = vector.broadcast %138 : vector<1x128xf32> to vector<8x128xf32>
    %141 = arith.addf %139, %140 : vector<8x128xf32>
    %142 = math.tanh %141 : vector<8x128xf32>
    %c12_42 = arith.constant 12 : index
    %143 = memref.load %arg5[%c12_42] : memref<32xf32, #tpu.memory_space<smem>>
    %144 = vector.broadcast %143 : f32 to vector<8x128xf32>
    %145 = arith.mulf %144, %142 : vector<8x128xf32>
    %146 = arith.addf %135, %145 : vector<8x128xf32>
    %147 = vector.extract_strided_slice %3 {offsets = [0, 13], sizes = [8, 1], strides = [1, 1]} : vector<8x32xf32> to vector<8x1xf32>
    %c0_43 = arith.constant 0 : index
    %c13 = arith.constant 13 : index
    %c0_44 = arith.constant 0 : index
    %148 = vector.load %arg4[%c0_43, %c13, %c0_44] : memref<1x32x128xf32, #tpu.memory_space<vmem>>, vector<1x1x128xf32>
    %149 = vector.shape_cast %148 : vector<1x1x128xf32> to vector<1x128xf32>
    %150 = vector.broadcast %147 : vector<8x1xf32> to vector<8x128xf32>
    %151 = vector.broadcast %149 : vector<1x128xf32> to vector<8x128xf32>
    %152 = arith.addf %150, %151 : vector<8x128xf32>
    %153 = math.tanh %152 : vector<8x128xf32>
    %c13_45 = arith.constant 13 : index
    %154 = memref.load %arg5[%c13_45] : memref<32xf32, #tpu.memory_space<smem>>
    %155 = vector.broadcast %154 : f32 to vector<8x128xf32>
    %156 = arith.mulf %155, %153 : vector<8x128xf32>
    %157 = arith.addf %146, %156 : vector<8x128xf32>
    %158 = vector.extract_strided_slice %3 {offsets = [0, 14], sizes = [8, 1], strides = [1, 1]} : vector<8x32xf32> to vector<8x1xf32>
    %c0_46 = arith.constant 0 : index
    %c14 = arith.constant 14 : index
    %c0_47 = arith.constant 0 : index
    %159 = vector.load %arg4[%c0_46, %c14, %c0_47] : memref<1x32x128xf32, #tpu.memory_space<vmem>>, vector<1x1x128xf32>
    %160 = vector.shape_cast %159 : vector<1x1x128xf32> to vector<1x128xf32>
    %161 = vector.broadcast %158 : vector<8x1xf32> to vector<8x128xf32>
    %162 = vector.broadcast %160 : vector<1x128xf32> to vector<8x128xf32>
    %163 = arith.addf %161, %162 : vector<8x128xf32>
    %164 = math.tanh %163 : vector<8x128xf32>
    %c14_48 = arith.constant 14 : index
    %165 = memref.load %arg5[%c14_48] : memref<32xf32, #tpu.memory_space<smem>>
    %166 = vector.broadcast %165 : f32 to vector<8x128xf32>
    %167 = arith.mulf %166, %164 : vector<8x128xf32>
    %168 = arith.addf %157, %167 : vector<8x128xf32>
    %169 = vector.extract_strided_slice %3 {offsets = [0, 15], sizes = [8, 1], strides = [1, 1]} : vector<8x32xf32> to vector<8x1xf32>
    %c0_49 = arith.constant 0 : index
    %c15 = arith.constant 15 : index
    %c0_50 = arith.constant 0 : index
    %170 = vector.load %arg4[%c0_49, %c15, %c0_50] : memref<1x32x128xf32, #tpu.memory_space<vmem>>, vector<1x1x128xf32>
    %171 = vector.shape_cast %170 : vector<1x1x128xf32> to vector<1x128xf32>
    %172 = vector.broadcast %169 : vector<8x1xf32> to vector<8x128xf32>
    %173 = vector.broadcast %171 : vector<1x128xf32> to vector<8x128xf32>
    %174 = arith.addf %172, %173 : vector<8x128xf32>
    %175 = math.tanh %174 : vector<8x128xf32>
    %c15_51 = arith.constant 15 : index
    %176 = memref.load %arg5[%c15_51] : memref<32xf32, #tpu.memory_space<smem>>
    %177 = vector.broadcast %176 : f32 to vector<8x128xf32>
    %178 = arith.mulf %177, %175 : vector<8x128xf32>
    %179 = arith.addf %168, %178 : vector<8x128xf32>
    %180 = vector.extract_strided_slice %3 {offsets = [0, 16], sizes = [8, 1], strides = [1, 1]} : vector<8x32xf32> to vector<8x1xf32>
    %c0_52 = arith.constant 0 : index
    %c16 = arith.constant 16 : index
    %c0_53 = arith.constant 0 : index
    %181 = vector.load %arg4[%c0_52, %c16, %c0_53] : memref<1x32x128xf32, #tpu.memory_space<vmem>>, vector<1x1x128xf32>
    %182 = vector.shape_cast %181 : vector<1x1x128xf32> to vector<1x128xf32>
    %183 = vector.broadcast %180 : vector<8x1xf32> to vector<8x128xf32>
    %184 = vector.broadcast %182 : vector<1x128xf32> to vector<8x128xf32>
    %185 = arith.addf %183, %184 : vector<8x128xf32>
    %186 = math.tanh %185 : vector<8x128xf32>
    %c16_54 = arith.constant 16 : index
    %187 = memref.load %arg5[%c16_54] : memref<32xf32, #tpu.memory_space<smem>>
    %188 = vector.broadcast %187 : f32 to vector<8x128xf32>
    %189 = arith.mulf %188, %186 : vector<8x128xf32>
    %190 = arith.addf %179, %189 : vector<8x128xf32>
    %191 = vector.extract_strided_slice %3 {offsets = [0, 17], sizes = [8, 1], strides = [1, 1]} : vector<8x32xf32> to vector<8x1xf32>
    %c0_55 = arith.constant 0 : index
    %c17 = arith.constant 17 : index
    %c0_56 = arith.constant 0 : index
    %192 = vector.load %arg4[%c0_55, %c17, %c0_56] : memref<1x32x128xf32, #tpu.memory_space<vmem>>, vector<1x1x128xf32>
    %193 = vector.shape_cast %192 : vector<1x1x128xf32> to vector<1x128xf32>
    %194 = vector.broadcast %191 : vector<8x1xf32> to vector<8x128xf32>
    %195 = vector.broadcast %193 : vector<1x128xf32> to vector<8x128xf32>
    %196 = arith.addf %194, %195 : vector<8x128xf32>
    %197 = math.tanh %196 : vector<8x128xf32>
    %c17_57 = arith.constant 17 : index
    %198 = memref.load %arg5[%c17_57] : memref<32xf32, #tpu.memory_space<smem>>
    %199 = vector.broadcast %198 : f32 to vector<8x128xf32>
    %200 = arith.mulf %199, %197 : vector<8x128xf32>
    %201 = arith.addf %190, %200 : vector<8x128xf32>
    %202 = vector.extract_strided_slice %3 {offsets = [0, 18], sizes = [8, 1], strides = [1, 1]} : vector<8x32xf32> to vector<8x1xf32>
    %c0_58 = arith.constant 0 : index
    %c18 = arith.constant 18 : index
    %c0_59 = arith.constant 0 : index
    %203 = vector.load %arg4[%c0_58, %c18, %c0_59] : memref<1x32x128xf32, #tpu.memory_space<vmem>>, vector<1x1x128xf32>
    %204 = vector.shape_cast %203 : vector<1x1x128xf32> to vector<1x128xf32>
    %205 = vector.broadcast %202 : vector<8x1xf32> to vector<8x128xf32>
    %206 = vector.broadcast %204 : vector<1x128xf32> to vector<8x128xf32>
    %207 = arith.addf %205, %206 : vector<8x128xf32>
    %208 = math.tanh %207 : vector<8x128xf32>
    %c18_60 = arith.constant 18 : index
    %209 = memref.load %arg5[%c18_60] : memref<32xf32, #tpu.memory_space<smem>>
    %210 = vector.broadcast %209 : f32 to vector<8x128xf32>
    %211 = arith.mulf %210, %208 : vector<8x128xf32>
    %212 = arith.addf %201, %211 : vector<8x128xf32>
    %213 = vector.extract_strided_slice %3 {offsets = [0, 19], sizes = [8, 1], strides = [1, 1]} : vector<8x32xf32> to vector<8x1xf32>
    %c0_61 = arith.constant 0 : index
    %c19 = arith.constant 19 : index
    %c0_62 = arith.constant 0 : index
    %214 = vector.load %arg4[%c0_61, %c19, %c0_62] : memref<1x32x128xf32, #tpu.memory_space<vmem>>, vector<1x1x128xf32>
    %215 = vector.shape_cast %214 : vector<1x1x128xf32> to vector<1x128xf32>
    %216 = vector.broadcast %213 : vector<8x1xf32> to vector<8x128xf32>
    %217 = vector.broadcast %215 : vector<1x128xf32> to vector<8x128xf32>
    %218 = arith.addf %216, %217 : vector<8x128xf32>
    %219 = math.tanh %218 : vector<8x128xf32>
    %c19_63 = arith.constant 19 : index
    %220 = memref.load %arg5[%c19_63] : memref<32xf32, #tpu.memory_space<smem>>
    %221 = vector.broadcast %220 : f32 to vector<8x128xf32>
    %222 = arith.mulf %221, %219 : vector<8x128xf32>
    %223 = arith.addf %212, %222 : vector<8x128xf32>
    %224 = vector.extract_strided_slice %3 {offsets = [0, 20], sizes = [8, 1], strides = [1, 1]} : vector<8x32xf32> to vector<8x1xf32>
    %c0_64 = arith.constant 0 : index
    %c20 = arith.constant 20 : index
    %c0_65 = arith.constant 0 : index
    %225 = vector.load %arg4[%c0_64, %c20, %c0_65] : memref<1x32x128xf32, #tpu.memory_space<vmem>>, vector<1x1x128xf32>
    %226 = vector.shape_cast %225 : vector<1x1x128xf32> to vector<1x128xf32>
    %227 = vector.broadcast %224 : vector<8x1xf32> to vector<8x128xf32>
    %228 = vector.broadcast %226 : vector<1x128xf32> to vector<8x128xf32>
    %229 = arith.addf %227, %228 : vector<8x128xf32>
    %230 = math.tanh %229 : vector<8x128xf32>
    %c20_66 = arith.constant 20 : index
    %231 = memref.load %arg5[%c20_66] : memref<32xf32, #tpu.memory_space<smem>>
    %232 = vector.broadcast %231 : f32 to vector<8x128xf32>
    %233 = arith.mulf %232, %230 : vector<8x128xf32>
    %234 = arith.addf %223, %233 : vector<8x128xf32>
    %235 = vector.extract_strided_slice %3 {offsets = [0, 21], sizes = [8, 1], strides = [1, 1]} : vector<8x32xf32> to vector<8x1xf32>
    %c0_67 = arith.constant 0 : index
    %c21 = arith.constant 21 : index
    %c0_68 = arith.constant 0 : index
    %236 = vector.load %arg4[%c0_67, %c21, %c0_68] : memref<1x32x128xf32, #tpu.memory_space<vmem>>, vector<1x1x128xf32>
    %237 = vector.shape_cast %236 : vector<1x1x128xf32> to vector<1x128xf32>
    %238 = vector.broadcast %235 : vector<8x1xf32> to vector<8x128xf32>
    %239 = vector.broadcast %237 : vector<1x128xf32> to vector<8x128xf32>
    %240 = arith.addf %238, %239 : vector<8x128xf32>
    %241 = math.tanh %240 : vector<8x128xf32>
    %c21_69 = arith.constant 21 : index
    %242 = memref.load %arg5[%c21_69] : memref<32xf32, #tpu.memory_space<smem>>
    %243 = vector.broadcast %242 : f32 to vector<8x128xf32>
    %244 = arith.mulf %243, %241 : vector<8x128xf32>
    %245 = arith.addf %234, %244 : vector<8x128xf32>
    %246 = vector.extract_strided_slice %3 {offsets = [0, 22], sizes = [8, 1], strides = [1, 1]} : vector<8x32xf32> to vector<8x1xf32>
    %c0_70 = arith.constant 0 : index
    %c22 = arith.constant 22 : index
    %c0_71 = arith.constant 0 : index
    %247 = vector.load %arg4[%c0_70, %c22, %c0_71] : memref<1x32x128xf32, #tpu.memory_space<vmem>>, vector<1x1x128xf32>
    %248 = vector.shape_cast %247 : vector<1x1x128xf32> to vector<1x128xf32>
    %249 = vector.broadcast %246 : vector<8x1xf32> to vector<8x128xf32>
    %250 = vector.broadcast %248 : vector<1x128xf32> to vector<8x128xf32>
    %251 = arith.addf %249, %250 : vector<8x128xf32>
    %252 = math.tanh %251 : vector<8x128xf32>
    %c22_72 = arith.constant 22 : index
    %253 = memref.load %arg5[%c22_72] : memref<32xf32, #tpu.memory_space<smem>>
    %254 = vector.broadcast %253 : f32 to vector<8x128xf32>
    %255 = arith.mulf %254, %252 : vector<8x128xf32>
    %256 = arith.addf %245, %255 : vector<8x128xf32>
    %257 = vector.extract_strided_slice %3 {offsets = [0, 23], sizes = [8, 1], strides = [1, 1]} : vector<8x32xf32> to vector<8x1xf32>
    %c0_73 = arith.constant 0 : index
    %c23 = arith.constant 23 : index
    %c0_74 = arith.constant 0 : index
    %258 = vector.load %arg4[%c0_73, %c23, %c0_74] : memref<1x32x128xf32, #tpu.memory_space<vmem>>, vector<1x1x128xf32>
    %259 = vector.shape_cast %258 : vector<1x1x128xf32> to vector<1x128xf32>
    %260 = vector.broadcast %257 : vector<8x1xf32> to vector<8x128xf32>
    %261 = vector.broadcast %259 : vector<1x128xf32> to vector<8x128xf32>
    %262 = arith.addf %260, %261 : vector<8x128xf32>
    %263 = math.tanh %262 : vector<8x128xf32>
    %c23_75 = arith.constant 23 : index
    %264 = memref.load %arg5[%c23_75] : memref<32xf32, #tpu.memory_space<smem>>
    %265 = vector.broadcast %264 : f32 to vector<8x128xf32>
    %266 = arith.mulf %265, %263 : vector<8x128xf32>
    %267 = arith.addf %256, %266 : vector<8x128xf32>
    %268 = vector.extract_strided_slice %3 {offsets = [0, 24], sizes = [8, 1], strides = [1, 1]} : vector<8x32xf32> to vector<8x1xf32>
    %c0_76 = arith.constant 0 : index
    %c24 = arith.constant 24 : index
    %c0_77 = arith.constant 0 : index
    %269 = vector.load %arg4[%c0_76, %c24, %c0_77] : memref<1x32x128xf32, #tpu.memory_space<vmem>>, vector<1x1x128xf32>
    %270 = vector.shape_cast %269 : vector<1x1x128xf32> to vector<1x128xf32>
    %271 = vector.broadcast %268 : vector<8x1xf32> to vector<8x128xf32>
    %272 = vector.broadcast %270 : vector<1x128xf32> to vector<8x128xf32>
    %273 = arith.addf %271, %272 : vector<8x128xf32>
    %274 = math.tanh %273 : vector<8x128xf32>
    %c24_78 = arith.constant 24 : index
    %275 = memref.load %arg5[%c24_78] : memref<32xf32, #tpu.memory_space<smem>>
    %276 = vector.broadcast %275 : f32 to vector<8x128xf32>
    %277 = arith.mulf %276, %274 : vector<8x128xf32>
    %278 = arith.addf %267, %277 : vector<8x128xf32>
    %279 = vector.extract_strided_slice %3 {offsets = [0, 25], sizes = [8, 1], strides = [1, 1]} : vector<8x32xf32> to vector<8x1xf32>
    %c0_79 = arith.constant 0 : index
    %c25 = arith.constant 25 : index
    %c0_80 = arith.constant 0 : index
    %280 = vector.load %arg4[%c0_79, %c25, %c0_80] : memref<1x32x128xf32, #tpu.memory_space<vmem>>, vector<1x1x128xf32>
    %281 = vector.shape_cast %280 : vector<1x1x128xf32> to vector<1x128xf32>
    %282 = vector.broadcast %279 : vector<8x1xf32> to vector<8x128xf32>
    %283 = vector.broadcast %281 : vector<1x128xf32> to vector<8x128xf32>
    %284 = arith.addf %282, %283 : vector<8x128xf32>
    %285 = math.tanh %284 : vector<8x128xf32>
    %c25_81 = arith.constant 25 : index
    %286 = memref.load %arg5[%c25_81] : memref<32xf32, #tpu.memory_space<smem>>
    %287 = vector.broadcast %286 : f32 to vector<8x128xf32>
    %288 = arith.mulf %287, %285 : vector<8x128xf32>
    %289 = arith.addf %278, %288 : vector<8x128xf32>
    %290 = vector.extract_strided_slice %3 {offsets = [0, 26], sizes = [8, 1], strides = [1, 1]} : vector<8x32xf32> to vector<8x1xf32>
    %c0_82 = arith.constant 0 : index
    %c26 = arith.constant 26 : index
    %c0_83 = arith.constant 0 : index
    %291 = vector.load %arg4[%c0_82, %c26, %c0_83] : memref<1x32x128xf32, #tpu.memory_space<vmem>>, vector<1x1x128xf32>
    %292 = vector.shape_cast %291 : vector<1x1x128xf32> to vector<1x128xf32>
    %293 = vector.broadcast %290 : vector<8x1xf32> to vector<8x128xf32>
    %294 = vector.broadcast %292 : vector<1x128xf32> to vector<8x128xf32>
    %295 = arith.addf %293, %294 : vector<8x128xf32>
    %296 = math.tanh %295 : vector<8x128xf32>
    %c26_84 = arith.constant 26 : index
    %297 = memref.load %arg5[%c26_84] : memref<32xf32, #tpu.memory_space<smem>>
    %298 = vector.broadcast %297 : f32 to vector<8x128xf32>
    %299 = arith.mulf %298, %296 : vector<8x128xf32>
    %300 = arith.addf %289, %299 : vector<8x128xf32>
    %301 = vector.extract_strided_slice %3 {offsets = [0, 27], sizes = [8, 1], strides = [1, 1]} : vector<8x32xf32> to vector<8x1xf32>
    %c0_85 = arith.constant 0 : index
    %c27 = arith.constant 27 : index
    %c0_86 = arith.constant 0 : index
    %302 = vector.load %arg4[%c0_85, %c27, %c0_86] : memref<1x32x128xf32, #tpu.memory_space<vmem>>, vector<1x1x128xf32>
    %303 = vector.shape_cast %302 : vector<1x1x128xf32> to vector<1x128xf32>
    %304 = vector.broadcast %301 : vector<8x1xf32> to vector<8x128xf32>
    %305 = vector.broadcast %303 : vector<1x128xf32> to vector<8x128xf32>
    %306 = arith.addf %304, %305 : vector<8x128xf32>
    %307 = math.tanh %306 : vector<8x128xf32>
    %c27_87 = arith.constant 27 : index
    %308 = memref.load %arg5[%c27_87] : memref<32xf32, #tpu.memory_space<smem>>
    %309 = vector.broadcast %308 : f32 to vector<8x128xf32>
    %310 = arith.mulf %309, %307 : vector<8x128xf32>
    %311 = arith.addf %300, %310 : vector<8x128xf32>
    %312 = vector.extract_strided_slice %3 {offsets = [0, 28], sizes = [8, 1], strides = [1, 1]} : vector<8x32xf32> to vector<8x1xf32>
    %c0_88 = arith.constant 0 : index
    %c28 = arith.constant 28 : index
    %c0_89 = arith.constant 0 : index
    %313 = vector.load %arg4[%c0_88, %c28, %c0_89] : memref<1x32x128xf32, #tpu.memory_space<vmem>>, vector<1x1x128xf32>
    %314 = vector.shape_cast %313 : vector<1x1x128xf32> to vector<1x128xf32>
    %315 = vector.broadcast %312 : vector<8x1xf32> to vector<8x128xf32>
    %316 = vector.broadcast %314 : vector<1x128xf32> to vector<8x128xf32>
    %317 = arith.addf %315, %316 : vector<8x128xf32>
    %318 = math.tanh %317 : vector<8x128xf32>
    %c28_90 = arith.constant 28 : index
    %319 = memref.load %arg5[%c28_90] : memref<32xf32, #tpu.memory_space<smem>>
    %320 = vector.broadcast %319 : f32 to vector<8x128xf32>
    %321 = arith.mulf %320, %318 : vector<8x128xf32>
    %322 = arith.addf %311, %321 : vector<8x128xf32>
    %323 = vector.extract_strided_slice %3 {offsets = [0, 29], sizes = [8, 1], strides = [1, 1]} : vector<8x32xf32> to vector<8x1xf32>
    %c0_91 = arith.constant 0 : index
    %c29 = arith.constant 29 : index
    %c0_92 = arith.constant 0 : index
    %324 = vector.load %arg4[%c0_91, %c29, %c0_92] : memref<1x32x128xf32, #tpu.memory_space<vmem>>, vector<1x1x128xf32>
    %325 = vector.shape_cast %324 : vector<1x1x128xf32> to vector<1x128xf32>
    %326 = vector.broadcast %323 : vector<8x1xf32> to vector<8x128xf32>
    %327 = vector.broadcast %325 : vector<1x128xf32> to vector<8x128xf32>
    %328 = arith.addf %326, %327 : vector<8x128xf32>
    %329 = math.tanh %328 : vector<8x128xf32>
    %c29_93 = arith.constant 29 : index
    %330 = memref.load %arg5[%c29_93] : memref<32xf32, #tpu.memory_space<smem>>
    %331 = vector.broadcast %330 : f32 to vector<8x128xf32>
    %332 = arith.mulf %331, %329 : vector<8x128xf32>
    %333 = arith.addf %322, %332 : vector<8x128xf32>
    %334 = vector.extract_strided_slice %3 {offsets = [0, 30], sizes = [8, 1], strides = [1, 1]} : vector<8x32xf32> to vector<8x1xf32>
    %c0_94 = arith.constant 0 : index
    %c30 = arith.constant 30 : index
    %c0_95 = arith.constant 0 : index
    %335 = vector.load %arg4[%c0_94, %c30, %c0_95] : memref<1x32x128xf32, #tpu.memory_space<vmem>>, vector<1x1x128xf32>
    %336 = vector.shape_cast %335 : vector<1x1x128xf32> to vector<1x128xf32>
    %337 = vector.broadcast %334 : vector<8x1xf32> to vector<8x128xf32>
    %338 = vector.broadcast %336 : vector<1x128xf32> to vector<8x128xf32>
    %339 = arith.addf %337, %338 : vector<8x128xf32>
    %340 = math.tanh %339 : vector<8x128xf32>
    %c30_96 = arith.constant 30 : index
    %341 = memref.load %arg5[%c30_96] : memref<32xf32, #tpu.memory_space<smem>>
    %342 = vector.broadcast %341 : f32 to vector<8x128xf32>
    %343 = arith.mulf %342, %340 : vector<8x128xf32>
    %344 = arith.addf %333, %343 : vector<8x128xf32>
    %345 = vector.extract_strided_slice %3 {offsets = [0, 31], sizes = [8, 1], strides = [1, 1]} : vector<8x32xf32> to vector<8x1xf32>
    %c0_97 = arith.constant 0 : index
    %c31 = arith.constant 31 : index
    %c0_98 = arith.constant 0 : index
    %346 = vector.load %arg4[%c0_97, %c31, %c0_98] : memref<1x32x128xf32, #tpu.memory_space<vmem>>, vector<1x1x128xf32>
    %347 = vector.shape_cast %346 : vector<1x1x128xf32> to vector<1x128xf32>
    %348 = vector.broadcast %345 : vector<8x1xf32> to vector<8x128xf32>
    %349 = vector.broadcast %347 : vector<1x128xf32> to vector<8x128xf32>
    %350 = arith.addf %348, %349 : vector<8x128xf32>
    %351 = math.tanh %350 : vector<8x128xf32>
    %c31_99 = arith.constant 31 : index
    %352 = memref.load %arg5[%c31_99] : memref<32xf32, #tpu.memory_space<smem>>
    %353 = vector.broadcast %352 : f32 to vector<8x128xf32>
    %354 = arith.mulf %353, %351 : vector<8x128xf32>
    %355 = arith.addf %344, %354 : vector<8x128xf32>
    %356 = vector.broadcast %0 : f32 to vector<8x128xf32>
    %357 = arith.addf %355, %356 : vector<8x128xf32>
    %c0_100 = arith.constant 0 : index
    %c0_101 = arith.constant 0 : index
    %c0_102 = arith.constant 0 : index
    %358 = vector.load %arg7[%c0_100, %c0_101, %c0_102] : memref<1x8x128xf32, #tpu.memory_space<vmem>>, vector<1x8x128xf32>
    %359 = vector.shape_cast %358 : vector<1x8x128xf32> to vector<8x128xf32>
    %360 = vector.shape_cast %357 : vector<8x128xf32> to vector<1x8x128xf32>
    tpu.vector_store %arg7[%c0_100, %c0_101, %c0_102], %360 {strides = array<i32>} : memref<1x8x128xf32, #tpu.memory_space<vmem>>, vector<1x8x128xf32>,
    return
  }
  func.func @transform_0(%arg0: i32, %arg1: i32, %arg2: i32) -> (i32, i32, i32) {
    %c0_i32 = arith.constant 0 : i32
    %c0_i32_0 = arith.constant 0 : i32
    return %arg0, %arg1, %c0_i32 : i32, i32, i32
  }
  func.func @transform_1(%arg0: i32, %arg1: i32, %arg2: i32) -> (i32, i32, i32) {
    %c0_i32 = arith.constant 0 : i32
    %c0_i32_0 = arith.constant 0 : i32
    return %arg0, %c0_i32, %arg2 : i32, i32, i32
  }
  func.func @transform_2(%arg0: i32, %arg1: i32, %arg2: i32) -> i32 {
    %c0_i32 = arith.constant 0 : i32
    %c0_i32_0 = arith.constant 0 : i32
    return %c0_i32 : i32
  }
  func.func @transform_3(%arg0: i32, %arg1: i32, %arg2: i32) -> i32 {
    %c0_i32 = arith.constant 0 : i32
    %c0_i32_0 = arith.constant 0 : i32
    return %c0_i32 : i32
  }
  func.func @transform_4(%arg0: i32, %arg1: i32, %arg2: i32) -> (i32, i32, i32) {
    %c0_i32 = arith.constant 0 : i32
    return %arg0, %arg1, %arg2 : i32, i32, i32
  }
}

</mosaic_0001>

<llo_original>
// kernel: tpu_custom_call.1
$region0: #{tpu_custom_call.1}
  #allocation0 [shape = 'u32[]', space=smem, size = 0x4, offset = 0x4, fixed_abs, tag = 'smem constant byte address 0x4 - core index']
  #allocation1 [shape = 'u32[144,128]{1,0:T(1,128)}', space=vmem, size = 0x12000, scoped, tag = 'internal scratch']
  #allocation2 [shape = 'f32[1]{0:T(128)S(6)}', space=smem, size = 0x200, scoped, tag = 'scoped memory for tpu_custom_call.1']
  %s0 = inlined_call_operand.hbm [shape: f32[2,8,32], index: 0, kind: input, shape index: {}]
  %s1 = inlined_call_operand.hbm [shape: f32[2,32,128], index: 1, kind: input, shape index: {}]
  %s2 = inlined_call_operand.vmem [shape: f32[32], index: 2, kind: input, shape index: {}]
  %s3 = inlined_call_operand.<no memory space> [shape: f32[1], index: 3, kind: input, shape index: {}]
  %s4 = inlined_call_operand.hbm [shape: f32[2,8,128], index: 4, kind: output, shape index: {}]
  %s5 = sld [smem:[#allocation0]]
  $region61: #{tpu_custom_call.1} parent=0
    _
  %s7 = ssub.s32 1, %s5
  %s8 = scalar_select 0, %s7, %s5
  %9 = sst [smem:[#allocation2]] %s3
  $region1: #{tpu_custom_call.1} parent=0
    #allocation3 [shape = 'u8[8192]{0}', space=vmem, size = 0x2000, scoped, tag = 'input window, operand 0']
    #allocation4 [shape = 's32[2]{0}', space=sflag, size = 0x8, scoped, tag = 'scoped memory for tpu_custom_call.1']
    #allocation5 [shape = 's32[2]{0}', space=sflag, size = 0x8, scoped, tag = 'scoped memory for tpu_custom_call.1']
    #allocation6 [shape = 's32[2]{0}', space=sflag, size = 0x8, scoped, tag = 'scoped memory for tpu_custom_call.1']
    #allocation7 [shape = 'u8[32768]{0}', space=vmem, size = 0x8000, scoped, tag = 'input window, operand 1']
    #allocation8 [shape = 's32[2]{0}', space=sflag, size = 0x8, scoped, tag = 'scoped memory for tpu_custom_call.1']
    #allocation9 [shape = 'u8[512]{0}', space=smem, size = 0x200, scoped, tag = 'input window, operand 2, single buffered']
    #allocation10 [shape = 'u8[8192]{0}', space=vmem, size = 0x2000, scoped, tag = 'output window, operand 0']
    %10 = vsyncpa [#allocation4], 0
    %s11 = scalar_lea.sflag [#allocation4], 1
    %12 = vsyncpa %s11, 0
    %13 = vsyncpa [#allocation8], 0
    %s14 = scalar_lea.sflag [#allocation8], 1
    %15 = vsyncpa %s14, 0
    %16 = vsyncpa [#allocation6], 0
    %17 = vsyncpa [#allocation5], 0
    %s18 = scalar_lea.sflag [#allocation5], 1
    %19 = vsyncpa %s18, 0
    loop: start=0, step=1, limit=4
    $region2: #{tpu_custom_call.1} parent=1 // loop_pre_header
      _
    $region3: #{tpu_custom_call.1} parent=1 // loop_header
      %s21 = sphi 0, %s25
      %p22 = scmp.ge.s32.totalorder %s21, 4
      %s28 = sphi 0, %s47
      %s29 = sphi 0, %s43
      %s30 = sphi 0, %s39
      %s31 = sphi 0, %s28
      %s32 = sphi 0, %s29
      %s33 = sphi 0, %s30
      %s34 = sphi 0, %s31
      %s35 = sphi 0, %s32
      %s36 = sphi 0, %s33
      %s52 = sphi 0, %s54
      %s55 = sphi 0, %s52
      %s56 = sphi 0, %s55
      %s72 = sphi 0, %s56
      %s80 = sphi 0, %s82
      %s83 = sphi 0, %s80
      %s84 = sphi 0, %s83
      %s100 = sphi 0, %s84
      %s104 = sphi 0, %s104
      %s106 = sphi 0, %s104
      %s107 = sphi 0, %s106
      %s121 = sphi 0, %s107
      %s125 = sphi 0, %s125
      %s127 = sphi 0, %s125
      %s128 = sphi 0, %s127
      %s142 = sphi 0, %s128
      %s152 = sphi 0, %s154
      %s155 = sphi 0, %s152
      %s156 = sphi 0, %s155
      %s172 = sphi 0, %s156
    $region4: #{tpu_custom_call.1} parent=1 // loop_header_branch
      %24 = sbr.rel (%p22) target = $region8
    $region5: #{tpu_custom_call.1} parent=1 // loop_body
      %s26 = ssub.s32 %s21, 1
      %s27 = ssub.s32 %s21, 2
      %s37 = sadd.s32 1, %s30
      %p38 = scmp.ge.s32.totalorder %s37, 1
      %s39 = scalar_select %p38, 0, %s37
      %s40 = sadd.s32 1, %s29
      %s41 = scalar_select %p38, %s40, %s29
      %p42 = scmp.ge.s32.totalorder %s41, 1
      %s43 = scalar_select %p42, 0, %s41
      %s44 = sadd.s32 1, %s28
      %s45 = scalar_select %p42, %s44, %s28
      %p46 = scmp.ge.s32.totalorder %s45, 2
      %s47 = scalar_select %p46, 0, %s45
      %s48 = ssub.s32 %s28, %s47
      %s49 = ssub.s32 %s29, %s43
      %s50 = sor.u32 %s48, %s49
      %p51 = scmp.eq.s32.totalorder %s50, 0
      %s53 = sadd.s32 %s52, 1
      %s54 = scalar_select %p51, %s52, %s53
      %p57 = pneg %p51
      %p58 = scmp.eq.s32.totalorder %s21, 1
      %p59 = por %p57, %p58
      %p60 = scmp.ne.s32.totalorder %s52, %s55
      %p61 = scmp.eq.s32.totalorder %s21, 0
      %p62 = por %p60, %p61
      %p63 = scmp.ne.s32.totalorder %s52, %s55
      %p64 = scmp.eq.s32.totalorder %s26, 1
      %p65 = por %p63, %p64
      %p66 = scmp.ne.s32.totalorder %s55, %s56
      %p67 = scmp.eq.s32.totalorder %s26, 0
      %p68 = por %p66, %p67
      %p69 = scmp.ne.s32.totalorder %s55, %s56
      %p70 = scmp.eq.s32.totalorder %s27, 1
      %p71 = por %p69, %p70
      %p73 = scmp.ne.s32.totalorder %s56, %s72
      %p74 = scmp.eq.s32.totalorder %s27, 0
      %p75 = por %p73, %p74
      %s76 = ssub.s32 %s28, %s47
      %s77 = ssub.s32 %s30, %s39
      %s78 = sor.u32 %s76, %s77
      %p79 = scmp.eq.s32.totalorder %s78, 0
      %s81 = sadd.s32 %s80, 1
      %s82 = scalar_select %p79, %s80, %s81
      %p85 = pneg %p79
      %p86 = scmp.eq.s32.totalorder %s21, 1
      %p87 = por %p85, %p86
      %p88 = scmp.ne.s32.totalorder %s80, %s83
      %p89 = scmp.eq.s32.totalorder %s21, 0
      %p90 = por %p88, %p89
      %p91 = scmp.ne.s32.totalorder %s80, %s83
      %p92 = scmp.eq.s32.totalorder %s26, 1
      %p93 = por %p91, %p92
      %p94 = scmp.ne.s32.totalorder %s83, %s84
      %p95 = scmp.eq.s32.totalorder %s26, 0
      %p96 = por %p94, %p95
      %p97 = scmp.ne.s32.totalorder %s83, %s84
      %p98 = scmp.eq.s32.totalorder %s27, 1
      %p99 = por %p97, %p98
      %p101 = scmp.ne.s32.totalorder %s84, %s100
      %p102 = scmp.eq.s32.totalorder %s27, 0
      %p103 = por %p101, %p102
      %s105 = sadd.s32 %s104, 1
      %p108 = scmp.eq.s32.totalorder %s21, 1
      %p109 = scmp.ne.s32.totalorder %s104, %s106
      %p110 = scmp.eq.s32.totalorder %s21, 0
      %p111 = por %p109, %p110
      %p112 = scmp.ne.s32.totalorder %s104, %s106
      %p113 = scmp.eq.s32.totalorder %s26, 1
      %p114 = por %p112, %p113
      %p115 = scmp.ne.s32.totalorder %s106, %s107
      %p116 = scmp.eq.s32.totalorder %s26, 0
      %p117 = por %p115, %p116
      %p118 = scmp.ne.s32.totalorder %s106, %s107
      %p119 = scmp.eq.s32.totalorder %s27, 1
      %p120 = por %p118, %p119
      %p122 = scmp.ne.s32.totalorder %s107, %s121
      %p123 = scmp.eq.s32.totalorder %s27, 0
      %p124 = por %p122, %p123
      %s126 = sadd.s32 %s125, 1
      %p129 = scmp.eq.s32.totalorder %s21, 1
      %p130 = scmp.ne.s32.totalorder %s125, %s127
      %p131 = scmp.eq.s32.totalorder %s21, 0
      %p132 = por %p130, %p131
      %p133 = scmp.ne.s32.totalorder %s125, %s127
      %p134 = scmp.eq.s32.totalorder %s26, 1
      %p135 = por %p133, %p134
      %p136 = scmp.ne.s32.totalorder %s127, %s128
      %p137 = scmp.eq.s32.totalorder %s26, 0
      %p138 = por %p136, %p137
      %p139 = scmp.ne.s32.totalorder %s127, %s128
      %p140 = scmp.eq.s32.totalorder %s27, 1
      %p141 = por %p139, %p140
      %p143 = scmp.ne.s32.totalorder %s128, %s142
      %p144 = scmp.eq.s32.totalorder %s27, 0
      %p145 = por %p143, %p144
      %s146 = ssub.s32 %s28, %s47
      %s147 = ssub.s32 %s29, %s43
      %s148 = sor.u32 %s146, %s147
      %s149 = ssub.s32 %s30, %s39
      %s150 = sor.u32 %s148, %s149
      %p151 = scmp.eq.s32.totalorder %s150, 0
      %s153 = sadd.s32 %s152, 1
      %s154 = scalar_select %p151, %s152, %s153
      %p157 = pneg %p151
      %p158 = scmp.eq.s32.totalorder %s21, 1
      %p159 = por %p157, %p158
      %p160 = scmp.ne.s32.totalorder %s152, %s155
      %p161 = scmp.eq.s32.totalorder %s21, 0
      %p162 = por %p160, %p161
      %p163 = scmp.ne.s32.totalorder %s152, %s155
      %p164 = scmp.eq.s32.totalorder %s26, 1
      %p165 = por %p163, %p164
      %p166 = scmp.ne.s32.totalorder %s155, %s156
      %p167 = scmp.eq.s32.totalorder %s26, 0
      %p168 = por %p166, %p167
      %p169 = scmp.ne.s32.totalorder %s155, %s156
      %p170 = scmp.eq.s32.totalorder %s27, 1
      %p171 = por %p169, %p170
      %p173 = scmp.ne.s32.totalorder %s156, %s172
      %p174 = scmp.eq.s32.totalorder %s27, 0
      %p175 = por %p173, %p174
      %p176 = scmp.le.s32.totalorder 1, %s21
      %p177 = scmp.lt.s32.totalorder %s21, 3
      %p178 = pnand %p176, %p177
      %p179 = pneg %p178
      // Predicated region
      $region9: #{tpu_custom_call.1} parent=5 // pred_check
        _
      $region10: #{tpu_custom_call.1} parent=5 // pred_check_branch
        %181 = sbr.rel (%p178) target = $region12
      $region11: #{tpu_custom_call.1} parent=5 // pred_region
        %s182 = ssub.s32 %s21, 1
        // Predicated region
        $region13: #{tpu_custom_call.1} parent=11 // pred_check
          %p183 = pneg %p117
        $region14: #{tpu_custom_call.1} parent=11 // pred_check_branch
          %185 = sbr.rel (%p183) target = $region16
        $region15: #{tpu_custom_call.1} parent=11 // pred_region
          %s187 = ssub.s32 16, 16
          %188 = vsyncadd [#allocation6], %s187
          %s190 = sshll.u32 %s2, 4
          %s191 = int_to_ptr.vmem [resolvable:$true] %s190
          %193 = dma.vmem_to_smem %s191, 16, [#allocation9], [#allocation6]
        $region16: #{tpu_custom_call.1} parent=11 // pred_fallthru
          _
        // Predicated region
        $region17: #{tpu_custom_call.1} parent=11 // pred_check
          %p194 = pneg %p138
        $region18: #{tpu_custom_call.1} parent=11 // pred_check_branch
          %196 = sbr.rel (%p194) target = $region20
        $region19: #{tpu_custom_call.1} parent=11 // pred_region
          _
        $region20: #{tpu_custom_call.1} parent=11 // pred_fallthru
          _
      $region12: #{tpu_custom_call.1} parent=5 // pred_fallthru
        _
      %p197 = scmp.lt.s32.totalorder %s21, 2
      // Predicated region
      $region21: #{tpu_custom_call.1} parent=5 // pred_check
        %p198 = pneg %p197
      $region22: #{tpu_custom_call.1} parent=5 // pred_check_branch
        %200 = sbr.rel (%p198) target = $region24
      $region23: #{tpu_custom_call.1} parent=5 // pred_region
        // Predicated region
        $region25: #{tpu_custom_call.1} parent=23 // pred_check
          %p201 = pneg %p62
        $region26: #{tpu_custom_call.1} parent=23 // pred_check_branch
          %203 = sbr.rel (%p201) target = $region28
        $region27: #{tpu_custom_call.1} parent=23 // pred_region
          %s204 = sand.u32 %s52, 1
          %s205 = scalar_lea.sflag [#allocation4], %s204
          %s206 = sand.u32 %s52, 1
          %s207 = smul.addr %s206, 8
          %s208 = scalar_lea.vmem [#allocation3], %s207
          %s210 = ssub.s32 128, 128
          %211 = vsyncadd %s205, %s210
          %s212 = sadd.s32 %s29, %s28
          %s213 = smul.addr %s212, 128
          %s214 = scalar_lea.hbm %s0, %s213
          %s216 = sshll.u32 %s208, 4
          %s217 = int_to_ptr.vmem [resolvable:$true] %s216
          %219 = dma.hbm_to_vmem [thread:$0]  %s214, 128, %s217, %s205
        $region28: #{tpu_custom_call.1} parent=23 // pred_fallthru
          _
        // Predicated region
        $region29: #{tpu_custom_call.1} parent=23 // pred_check
          %p220 = pneg %p90
        $region30: #{tpu_custom_call.1} parent=23 // pred_check_branch
          %222 = sbr.rel (%p220) target = $region32
        $region31: #{tpu_custom_call.1} parent=23 // pred_region
          %s223 = sand.u32 %s80, 1
          %s224 = scalar_lea.sflag [#allocation8], %s223
          %s225 = sand.u32 %s80, 1
          %s226 = smul.addr %s225, 32
          %s227 = scalar_lea.vmem [#allocation7], %s226
          %s229 = ssub.s32 512, 512
          %230 = vsyncadd %s224, %s229
          %s231 = smul.addr %s28, 4
          %s232 = sadd.s32 %s30, %s231
          %s233 = smul.addr %s232, 128
          %s234 = scalar_lea.hbm %s1, %s233
          %s235 = sshll.u32 %s227, 4
          %s236 = int_to_ptr.vmem [resolvable:$true] %s235
          %241 = dma.hbm_to_vmem [thread:$0]  %s234, 512, %s236, %s224, 128, 128, 8
        $region32: #{tpu_custom_call.1} parent=23 // pred_fallthru
          _
      $region24: #{tpu_custom_call.1} parent=5 // pred_fallthru
        _
      %p242 = scmp.le.s32.totalorder 1, %s21
      %p243 = scmp.lt.s32.totalorder %s21, 3
      %p244 = pnand %p242, %p243
      %p245 = pneg %p244
      // Predicated region
      $region33: #{tpu_custom_call.1} parent=5 // pred_check
        _
      $region34: #{tpu_custom_call.1} parent=5 // pred_check_branch
        %247 = sbr.rel (%p244) target = $region36
      $region35: #{tpu_custom_call.1} parent=5 // pred_region
        %s248 = ssub.s32 %s21, 1
        %s249 = sand.u32 %s55, 1
        %s250 = scalar_lea.sflag [#allocation4], %s249
        %s251 = sand.u32 %s55, 1
        %s252 = smul.addr %s251, 8
        %s253 = scalar_lea.vmem [#allocation3], %s252
        // Predicated region
        $region37: #{tpu_custom_call.1} parent=35 // pred_check
          %p254 = pneg %p68
        $region38: #{tpu_custom_call.1} parent=35 // pred_check_branch
          %256 = sbr.rel (%p254) target = $region40
        $region39: #{tpu_custom_call.1} parent=35 // pred_region
          %257 = dma.done %s250, 128
        $region40: #{tpu_custom_call.1} parent=35 // pred_fallthru
          _
        %s258 = sand.u32 %s83, 1
        %s259 = scalar_lea.sflag [#allocation8], %s258
        %s260 = sand.u32 %s83, 1
        %s261 = smul.addr %s260, 32
        %s262 = scalar_lea.vmem [#allocation7], %s261
        // Predicated region
        $region41: #{tpu_custom_call.1} parent=35 // pred_check
          %p263 = pneg %p96
        $region42: #{tpu_custom_call.1} parent=35 // pred_check_branch
          %265 = sbr.rel (%p263) target = $region44
        $region43: #{tpu_custom_call.1} parent=35 // pred_region
          %266 = dma.done %s259, 512
        $region44: #{tpu_custom_call.1} parent=35 // pred_fallthru
          _
        // Predicated region
        $region45: #{tpu_custom_call.1} parent=35 // pred_check
          %p267 = pneg %p117
        $region46: #{tpu_custom_call.1} parent=35 // pred_check_branch
          %269 = sbr.rel (%p267) target = $region48
        $region47: #{tpu_custom_call.1} parent=35 // pred_region
          %270 = dma.done [#allocation6], 16
        $region48: #{tpu_custom_call.1} parent=35 // pred_fallthru
          _
        %271 = sfence
        %s272 = sand.u32 %s55, 1
        %s273 = scalar_lea.sflag [#allocation4], %s272
        %s274 = sand.u32 %s55, 1
        %s275 = smul.addr %s274, 8
        %s276 = scalar_lea.vmem [#allocation3], %s275
        %p277 = pneg %p68
        %p278 = pneg %p65
        %s279 = sand.u32 %s83, 1
        %s280 = scalar_lea.sflag [#allocation8], %s279
        %s281 = sand.u32 %s83, 1
        %s282 = smul.addr %s281, 32
        %s283 = scalar_lea.vmem [#allocation7], %s282
        %p284 = pneg %p96
        %p285 = pneg %p93
        %p286 = pneg %p117
        %p287 = pneg %p114
        %p288 = pneg %p138
        %p289 = pneg %p135
        %p290 = pneg %p168
        %p291 = pneg %p165
        %s292 = sand.u32 %s155, 1
        %s293 = scalar_lea.sflag [#allocation5], %s292
        %s294 = sand.u32 %s155, 1
        %s295 = smul.addr %s294, 8
        %s296 = scalar_lea.vmem [#allocation10], %s295
        %s297 = sld [smem:[#allocation2]]
        %v298 = vld [vmem:[%s253] sm:$0xff]
        %v299 = vld [vmem:[%s262] sm:$0x1]
        %301 = vset.pattern.permute.xlu0 0
        %302 = vperm.xlu0 %301, %v298
        %v303 = vpop.permute.xlu0 %302
        %v305 = vlaneseq
        %v306 = vshrl.u32 %v305, 7
        %v307 = vsub.s32 0, %v306
        %v308 = vrot.slane %v299, %v307
        %v309 = vadd.f32 %v303, %v308
        %v310 = vtanh.pop %v309
        %s311 = sld [smem:[#allocation9]]
        %v312 = vstv %s311
        %v313 = vmul.f32 %v312, %v310
        %v314 = vadd.f32 %v313, 0.0
        %v315 = vld [vmem:[%s262 + $0x1] sm:$0x1]
        %316 = vset.pattern.permute.xlu0 1
        %317 = vperm.xlu0 %316, %v298
        %v318 = vpop.permute.xlu0 %317
        %v320 = vlaneseq
        %v321 = vshrl.u32 %v320, 7
        %v322 = vsub.s32 0, %v321
        %v323 = vrot.slane %v315, %v322
        %v324 = vadd.f32 %v318, %v323
        %v325 = vtanh.pop %v324
        %s326 = sld [smem:[#allocation9 + $0x1]]
        %v327 = vstv %s326
        %v328 = vmul.f32 %v327, %v325
        %v329 = vadd.f32 %v314, %v328
        %v330 = vld [vmem:[%s262 + $0x2] sm:$0x1]
        %331 = vset.pattern.permute.xlu0 2
        %332 = vperm.xlu0 %331, %v298
        %v333 = vpop.permute.xlu0 %332
        %v335 = vlaneseq
        %v336 = vshrl.u32 %v335, 7
        %v337 = vsub.s32 0, %v336
        %v338 = vrot.slane %v330, %v337
        %v339 = vadd.f32 %v333, %v338
        %v340 = vtanh.pop %v339
        %s341 = sld [smem:[#allocation9 + $0x2]]
        %v342 = vstv %s341
        %v343 = vmul.f32 %v342, %v340
        %v344 = vadd.f32 %v329, %v343
        %v345 = vld [vmem:[%s262 + $0x3] sm:$0x1]
        %346 = vset.pattern.permute.xlu0 3
        %347 = vperm.xlu0 %346, %v298
        %v348 = vpop.permute.xlu0 %347
        %v350 = vlaneseq
        %v351 = vshrl.u32 %v350, 7
        %v352 = vsub.s32 0, %v351
        %v353 = vrot.slane %v345, %v352
        %v354 = vadd.f32 %v348, %v353
        %v355 = vtanh.pop %v354
        %s356 = sld [smem:[#allocation9 + $0x3]]
        %v357 = vstv %s356
        %v358 = vmul.f32 %v357, %v355
        %v359 = vadd.f32 %v344, %v358
        %v360 = vld [vmem:[%s262 + $0x4] sm:$0x1]
        %361 = vset.pattern.permute.xlu0 4
        %362 = vperm.xlu0 %361, %v298
        %v363 = vpop.permute.xlu0 %362
        %v365 = vlaneseq
        %v366 = vshrl.u32 %v365, 7
        %v367 = vsub.s32 0, %v366
        %v368 = vrot.slane %v360, %v367
        %v369 = vadd.f32 %v363, %v368
        %v370 = vtanh.pop %v369
        %s371 = sld [smem:[#allocation9 + $0x4]]
        %v372 = vstv %s371
        %v373 = vmul.f32 %v372, %v370
        %v374 = vadd.f32 %v359, %v373
        %v375 = vld [vmem:[%s262 + $0x5] sm:$0x1]
        %376 = vset.pattern.permute.xlu0 5
        %377 = vperm.xlu0 %376, %v298
        %v378 = vpop.permute.xlu0 %377
        %v380 = vlaneseq
        %v381 = vshrl.u32 %v380, 7
        %v382 = vsub.s32 0, %v381
        %v383 = vrot.slane %v375, %v382
        %v384 = vadd.f32 %v378, %v383
        %v385 = vtanh.pop %v384
        %s386 = sld [smem:[#allocation9 + $0x5]]
        %v387 = vstv %s386
        %v388 = vmul.f32 %v387, %v385
        %v389 = vadd.f32 %v374, %v388
        %v390 = vld [vmem:[%s262 + $0x6] sm:$0x1]
        %391 = vset.pattern.permute.xlu0 6
        %392 = vperm.xlu0 %391, %v298
        %v393 = vpop.permute.xlu0 %392
        %v395 = vlaneseq
        %v396 = vshrl.u32 %v395, 7
        %v397 = vsub.s32 0, %v396
        %v398 = vrot.slane %v390, %v397
        %v399 = vadd.f32 %v393, %v398
        %v400 = vtanh.pop %v399
        %s401 = sld [smem:[#allocation9 + $0x6]]
        %v402 = vstv %s401
        %v403 = vmul.f32 %v402, %v400
        %v404 = vadd.f32 %v389, %v403
        %v405 = vld [vmem:[%s262 + $0x7] sm:$0x1]
        %406 = vset.pattern.permute.xlu0 7
        %407 = vperm.xlu0 %406, %v298
        %v408 = vpop.permute.xlu0 %407
        %v410 = vlaneseq
        %v411 = vshrl.u32 %v410, 7
        %v412 = vsub.s32 0, %v411
        %v413 = vrot.slane %v405, %v412
        %v414 = vadd.f32 %v408, %v413
        %v415 = vtanh.pop %v414
        %s416 = sld [smem:[#allocation9 + $0x7]]
        %v417 = vstv %s416
        %v418 = vmul.f32 %v417, %v415
        %v419 = vadd.f32 %v404, %v418
        %v420 = vld [vmem:[%s262 + $0x8] sm:$0x1]
        %421 = vset.pattern.permute.xlu0 8
        %422 = vperm.xlu0 %421, %v298
        %v423 = vpop.permute.xlu0 %422
        %v425 = vlaneseq
        %v426 = vshrl.u32 %v425, 7
        %v427 = vsub.s32 0, %v426
        %v428 = vrot.slane %v420, %v427
        %v429 = vadd.f32 %v423, %v428
        %v430 = vtanh.pop %v429
        %s431 = sld [smem:[#allocation9 + $0x8]]
        %v432 = vstv %s431
        %v433 = vmul.f32 %v432, %v430
        %v434 = vadd.f32 %v419, %v433
        %v435 = vld [vmem:[%s262 + $0x9] sm:$0x1]
        %436 = vset.pattern.permute.xlu0 9
        %437 = vperm.xlu0 %436, %v298
        %v438 = vpop.permute.xlu0 %437
        %v440 = vlaneseq
        %v441 = vshrl.u32 %v440, 7
        %v442 = vsub.s32 0, %v441
        %v443 = vrot.slane %v435, %v442
        %v444 = vadd.f32 %v438, %v443
        %v445 = vtanh.pop %v444
        %s446 = sld [smem:[#allocation9 + $0x9]]
        %v447 = vstv %s446
        %v448 = vmul.f32 %v447, %v445
        %v449 = vadd.f32 %v434, %v448
        %v450 = vld [vmem:[%s262 + $0xa] sm:$0x1]
        %451 = vset.pattern.permute.xlu0 10
        %452 = vperm.xlu0 %451, %v298
        %v453 = vpop.permute.xlu0 %452
        %v455 = vlaneseq
        %v456 = vshrl.u32 %v455, 7
        %v457 = vsub.s32 0, %v456
        %v458 = vrot.slane %v450, %v457
        %v459 = vadd.f32 %v453, %v458
        %v460 = vtanh.pop %v459
        %s461 = sld [smem:[#allocation9 + $0xa]]
        %v462 = vstv %s461
        %v463 = vmul.f32 %v462, %v460
        %v464 = vadd.f32 %v449, %v463
        %v465 = vld [vmem:[%s262 + $0xb] sm:$0x1]
        %466 = vset.pattern.permute.xlu0 11
        %467 = vperm.xlu0 %466, %v298
        %v468 = vpop.permute.xlu0 %467
        %v470 = vlaneseq
        %v471 = vshrl.u32 %v470, 7
        %v472 = vsub.s32 0, %v471
        %v473 = vrot.slane %v465, %v472
        %v474 = vadd.f32 %v468, %v473
        %v475 = vtanh.pop %v474
        %s476 = sld [smem:[#allocation9 + $0xb]]
        %v477 = vstv %s476
        %v478 = vmul.f32 %v477, %v475
        %v479 = vadd.f32 %v464, %v478
        %v480 = vld [vmem:[%s262 + $0xc] sm:$0x1]
        %481 = vset.pattern.permute.xlu0 12
        %482 = vperm.xlu0 %481, %v298
        %v483 = vpop.permute.xlu0 %482
        %v485 = vlaneseq
        %v486 = vshrl.u32 %v485, 7
        %v487 = vsub.s32 0, %v486
        %v488 = vrot.slane %v480, %v487
        %v489 = vadd.f32 %v483, %v488
        %v490 = vtanh.pop %v489
        %s491 = sld [smem:[#allocation9 + $0xc]]
        %v492 = vstv %s491
        %v493 = vmul.f32 %v492, %v490
        %v494 = vadd.f32 %v479, %v493
        %v495 = vld [vmem:[%s262 + $0xd] sm:$0x1]
        %496 = vset.pattern.permute.xlu0 13
        %497 = vperm.xlu0 %496, %v298
        %v498 = vpop.permute.xlu0 %497
        %v500 = vlaneseq
        %v501 = vshrl.u32 %v500, 7
        %v502 = vsub.s32 0, %v501
        %v503 = vrot.slane %v495, %v502
        %v504 = vadd.f32 %v498, %v503
        %v505 = vtanh.pop %v504
        %s506 = sld [smem:[#allocation9 + $0xd]]
        %v507 = vstv %s506
        %v508 = vmul.f32 %v507, %v505
        %v509 = vadd.f32 %v494, %v508
        %v510 = vld [vmem:[%s262 + $0xe] sm:$0x1]
        %511 = vset.pattern.permute.xlu0 14
        %512 = vperm.xlu0 %511, %v298
        %v513 = vpop.permute.xlu0 %512
        %v515 = vlaneseq
        %v516 = vshrl.u32 %v515, 7
        %v517 = vsub.s32 0, %v516
        %v518 = vrot.slane %v510, %v517
        %v519 = vadd.f32 %v513, %v518
        %v520 = vtanh.pop %v519
        %s521 = sld [smem:[#allocation9 + $0xe]]
        %v522 = vstv %s521
        %v523 = vmul.f32 %v522, %v520
        %v524 = vadd.f32 %v509, %v523
        %v525 = vld [vmem:[%s262 + $0xf] sm:$0x1]
        %526 = vset.pattern.permute.xlu0 15
        %527 = vperm.xlu0 %526, %v298
        %v528 = vpop.permute.xlu0 %527
        %v530 = vlaneseq
        %v531 = vshrl.u32 %v530, 7
        %v532 = vsub.s32 0, %v531
        %v533 = vrot.slane %v525, %v532
        %v534 = vadd.f32 %v528, %v533
        %v535 = vtanh.pop %v534
        %s536 = sld [smem:[#allocation9 + $0xf]]
        %v537 = vstv %s536
        %v538 = vmul.f32 %v537, %v535
        %v539 = vadd.f32 %v524, %v538
        %v540 = vld [vmem:[%s262 + $0x10] sm:$0x1]
        %541 = vset.pattern.permute.xlu0 16
        %542 = vperm.xlu0 %541, %v298
        %v543 = vpop.permute.xlu0 %542
        %v545 = vlaneseq
        %v546 = vshrl.u32 %v545, 7
        %v547 = vsub.s32 0, %v546
        %v548 = vrot.slane %v540, %v547
        %v549 = vadd.f32 %v543, %v548
        %v550 = vtanh.pop %v549
        %s551 = sld [smem:[#allocation9 + $0x10]]
        %v552 = vstv %s551
        %v553 = vmul.f32 %v552, %v550
        %v554 = vadd.f32 %v539, %v553
        %v555 = vld [vmem:[%s262 + $0x11] sm:$0x1]
        %556 = vset.pattern.permute.xlu0 17
        %557 = vperm.xlu0 %556, %v298
        %v558 = vpop.permute.xlu0 %557
        %v560 = vlaneseq
        %v561 = vshrl.u32 %v560, 7
        %v562 = vsub.s32 0, %v561
        %v563 = vrot.slane %v555, %v562
        %v564 = vadd.f32 %v558, %v563
        %v565 = vtanh.pop %v564
        %s566 = sld [smem:[#allocation9 + $0x11]]
        %v567 = vstv %s566
        %v568 = vmul.f32 %v567, %v565
        %v569 = vadd.f32 %v554, %v568
        %v570 = vld [vmem:[%s262 + $0x12] sm:$0x1]
        %571 = vset.pattern.permute.xlu0 18
        %572 = vperm.xlu0 %571, %v298
        %v573 = vpop.permute.xlu0 %572
        %v575 = vlaneseq
        %v576 = vshrl.u32 %v575, 7
        %v577 = vsub.s32 0, %v576
        %v578 = vrot.slane %v570, %v577
        %v579 = vadd.f32 %v573, %v578
        %v580 = vtanh.pop %v579
        %s581 = sld [smem:[#allocation9 + $0x12]]
        %v582 = vstv %s581
        %v583 = vmul.f32 %v582, %v580
        %v584 = vadd.f32 %v569, %v583
        %v585 = vld [vmem:[%s262 + $0x13] sm:$0x1]
        %586 = vset.pattern.permute.xlu0 19
        %587 = vperm.xlu0 %586, %v298
        %v588 = vpop.permute.xlu0 %587
        %v590 = vlaneseq
        %v591 = vshrl.u32 %v590, 7
        %v592 = vsub.s32 0, %v591
        %v593 = vrot.slane %v585, %v592
        %v594 = vadd.f32 %v588, %v593
        %v595 = vtanh.pop %v594
        %s596 = sld [smem:[#allocation9 + $0x13]]
        %v597 = vstv %s596
        %v598 = vmul.f32 %v597, %v595
        %v599 = vadd.f32 %v584, %v598
        %v600 = vld [vmem:[%s262 + $0x14] sm:$0x1]
        %601 = vset.pattern.permute.xlu0 20
        %602 = vperm.xlu0 %601, %v298
        %v603 = vpop.permute.xlu0 %602
        %v605 = vlaneseq
        %v606 = vshrl.u32 %v605, 7
        %v607 = vsub.s32 0, %v606
        %v608 = vrot.slane %v600, %v607
        %v609 = vadd.f32 %v603, %v608
        %v610 = vtanh.pop %v609
        %s611 = sld [smem:[#allocation9 + $0x14]]
        %v612 = vstv %s611
        %v613 = vmul.f32 %v612, %v610
        %v614 = vadd.f32 %v599, %v613
        %v615 = vld [vmem:[%s262 + $0x15] sm:$0x1]
        %616 = vset.pattern.permute.xlu0 21
        %617 = vperm.xlu0 %616, %v298
        %v618 = vpop.permute.xlu0 %617
        %v620 = vlaneseq
        %v621 = vshrl.u32 %v620, 7
        %v622 = vsub.s32 0, %v621
        %v623 = vrot.slane %v615, %v622
        %v624 = vadd.f32 %v618, %v623
        %v625 = vtanh.pop %v624
        %s626 = sld [smem:[#allocation9 + $0x15]]
        %v627 = vstv %s626
        %v628 = vmul.f32 %v627, %v625
        %v629 = vadd.f32 %v614, %v628
        %v630 = vld [vmem:[%s262 + $0x16] sm:$0x1]
        %631 = vset.pattern.permute.xlu0 22
        %632 = vperm.xlu0 %631, %v298
        %v633 = vpop.permute.xlu0 %632
        %v635 = vlaneseq
        %v636 = vshrl.u32 %v635, 7
        %v637 = vsub.s32 0, %v636
        %v638 = vrot.slane %v630, %v637
        %v639 = vadd.f32 %v633, %v638
        %v640 = vtanh.pop %v639
        %s641 = sld [smem:[#allocation9 + $0x16]]
        %v642 = vstv %s641
        %v643 = vmul.f32 %v642, %v640
        %v644 = vadd.f32 %v629, %v643
        %v645 = vld [vmem:[%s262 + $0x17] sm:$0x1]
        %646 = vset.pattern.permute.xlu0 23
        %647 = vperm.xlu0 %646, %v298
        %v648 = vpop.permute.xlu0 %647
        %v650 = vlaneseq
        %v651 = vshrl.u32 %v650, 7
        %v652 = vsub.s32 0, %v651
        %v653 = vrot.slane %v645, %v652
        %v654 = vadd.f32 %v648, %v653
        %v655 = vtanh.pop %v654
        %s656 = sld [smem:[#allocation9 + $0x17]]
        %v657 = vstv %s656
        %v658 = vmul.f32 %v657, %v655
        %v659 = vadd.f32 %v644, %v658
        %v660 = vld [vmem:[%s262 + $0x18] sm:$0x1]
        %661 = vset.pattern.permute.xlu0 24
        %662 = vperm.xlu0 %661, %v298
        %v663 = vpop.permute.xlu0 %662
        %v665 = vlaneseq
        %v666 = vshrl.u32 %v665, 7
        %v667 = vsub.s32 0, %v666
        %v668 = vrot.slane %v660, %v667
        %v669 = vadd.f32 %v663, %v668
        %v670 = vtanh.pop %v669
        %s671 = sld [smem:[#allocation9 + $0x18]]
        %v672 = vstv %s671
        %v673 = vmul.f32 %v672, %v670
        %v674 = vadd.f32 %v659, %v673
        %v675 = vld [vmem:[%s262 + $0x19] sm:$0x1]
        %676 = vset.pattern.permute.xlu0 25
        %677 = vperm.xlu0 %676, %v298
        %v678 = vpop.permute.xlu0 %677
        %v680 = vlaneseq
        %v681 = vshrl.u32 %v680, 7
        %v682 = vsub.s32 0, %v681
        %v683 = vrot.slane %v675, %v682
        %v684 = vadd.f32 %v678, %v683
        %v685 = vtanh.pop %v684
        %s686 = sld [smem:[#allocation9 + $0x19]]
        %v687 = vstv %s686
        %v688 = vmul.f32 %v687, %v685
        %v689 = vadd.f32 %v674, %v688
        %v690 = vld [vmem:[%s262 + $0x1a] sm:$0x1]
        %691 = vset.pattern.permute.xlu0 26
        %692 = vperm.xlu0 %691, %v298
        %v693 = vpop.permute.xlu0 %692
        %v695 = vlaneseq
        %v696 = vshrl.u32 %v695, 7
        %v697 = vsub.s32 0, %v696
        %v698 = vrot.slane %v690, %v697
        %v699 = vadd.f32 %v693, %v698
        %v700 = vtanh.pop %v699
        %s701 = sld [smem:[#allocation9 + $0x1a]]
        %v702 = vstv %s701
        %v703 = vmul.f32 %v702, %v700
        %v704 = vadd.f32 %v689, %v703
        %v705 = vld [vmem:[%s262 + $0x1b] sm:$0x1]
        %706 = vset.pattern.permute.xlu0 27
        %707 = vperm.xlu0 %706, %v298
        %v708 = vpop.permute.xlu0 %707
        %v710 = vlaneseq
        %v711 = vshrl.u32 %v710, 7
        %v712 = vsub.s32 0, %v711
        %v713 = vrot.slane %v705, %v712
        %v714 = vadd.f32 %v708, %v713
        %v715 = vtanh.pop %v714
        %s716 = sld [smem:[#allocation9 + $0x1b]]
        %v717 = vstv %s716
        %v718 = vmul.f32 %v717, %v715
        %v719 = vadd.f32 %v704, %v718
        %v720 = vld [vmem:[%s262 + $0x1c] sm:$0x1]
        %721 = vset.pattern.permute.xlu0 28
        %722 = vperm.xlu0 %721, %v298
        %v723 = vpop.permute.xlu0 %722
        %v725 = vlaneseq
        %v726 = vshrl.u32 %v725, 7
        %v727 = vsub.s32 0, %v726
        %v728 = vrot.slane %v720, %v727
        %v729 = vadd.f32 %v723, %v728
        %v730 = vtanh.pop %v729
        %s731 = sld [smem:[#allocation9 + $0x1c]]
        %v732 = vstv %s731
        %v733 = vmul.f32 %v732, %v730
        %v734 = vadd.f32 %v719, %v733
        %v735 = vld [vmem:[%s262 + $0x1d] sm:$0x1]
        %736 = vset.pattern.permute.xlu0 29
        %737 = vperm.xlu0 %736, %v298
        %v738 = vpop.permute.xlu0 %737
        %v740 = vlaneseq
        %v741 = vshrl.u32 %v740, 7
        %v742 = vsub.s32 0, %v741
        %v743 = vrot.slane %v735, %v742
        %v744 = vadd.f32 %v738, %v743
        %v745 = vtanh.pop %v744
        %s746 = sld [smem:[#allocation9 + $0x1d]]
        %v747 = vstv %s746
        %v748 = vmul.f32 %v747, %v745
        %v749 = vadd.f32 %v734, %v748
        %v750 = vld [vmem:[%s262 + $0x1e] sm:$0x1]
        %751 = vset.pattern.permute.xlu0 30
        %752 = vperm.xlu0 %751, %v298
        %v753 = vpop.permute.xlu0 %752
        %v755 = vlaneseq
        %v756 = vshrl.u32 %v755, 7
        %v757 = vsub.s32 0, %v756
        %v758 = vrot.slane %v750, %v757
        %v759 = vadd.f32 %v753, %v758
        %v760 = vtanh.pop %v759
        %s761 = sld [smem:[#allocation9 + $0x1e]]
        %v762 = vstv %s761
        %v763 = vmul.f32 %v762, %v760
        %v764 = vadd.f32 %v749, %v763
        %v765 = vld [vmem:[%s262 + $0x1f] sm:$0x1]
        %766 = vset.pattern.permute.xlu0 31
        %767 = vperm.xlu0 %766, %v298
        %v768 = vpop.permute.xlu0 %767
        %v770 = vlaneseq
        %v771 = vshrl.u32 %v770, 7
        %v772 = vsub.s32 0, %v771
        %v773 = vrot.slane %v765, %v772
        %v774 = vadd.f32 %v768, %v773
        %v775 = vtanh.pop %v774
        %s776 = sld [smem:[#allocation9 + $0x1f]]
        %v777 = vstv %s776
        %v778 = vmul.f32 %v777, %v775
        %v779 = vadd.f32 %v764, %v778
        %v780 = vstv %s297
        %v781 = vadd.f32 %v779, %v780
        %782 = vst [vmem:[%s296] sm:$0xff] %v781
        %s783 = sand.u32 %s155, 1
        %s784 = scalar_lea.sflag [#allocation5], %s783
        %s785 = sand.u32 %s155, 1
        %s786 = smul.addr %s785, 8
        %s787 = scalar_lea.vmem [#allocation10], %s786
        // Predicated region
        $region49: #{tpu_custom_call.1} parent=35 // pred_check
          %p788 = pneg %p165
        $region50: #{tpu_custom_call.1} parent=35 // pred_check_branch
          %790 = sbr.rel (%p788) target = $region52
        $region51: #{tpu_custom_call.1} parent=35 // pred_region
          %s792 = ssub.s32 128, 128
          %793 = vsyncadd %s784, %s792
          %s794 = sadd.s32 %s33, %s32
          %s795 = sadd.s32 %s794, %s31
          %s796 = smul.addr %s795, 128
          %s797 = scalar_lea.hbm %s4, %s796
          %s799 = sshll.u32 %s787, 4
          %s800 = int_to_ptr.vmem [resolvable:$true] %s799
          %802 = dma.vmem_to_hbm [thread:$0]  %s800, 128, %s797, %s784
        $region52: #{tpu_custom_call.1} parent=35 // pred_fallthru
          _
      $region36: #{tpu_custom_call.1} parent=5 // pred_fallthru
        _
      %p803 = scmp.le.s32.totalorder 2, %s21
      // Predicated region
      $region53: #{tpu_custom_call.1} parent=5 // pred_check
        %p804 = pneg %p803
      $region54: #{tpu_custom_call.1} parent=5 // pred_check_branch
        %806 = sbr.rel (%p804) target = $region56
      $region55: #{tpu_custom_call.1} parent=5 // pred_region
        %s807 = ssub.s32 %s21, 2
        // Predicated region
        $region57: #{tpu_custom_call.1} parent=55 // pred_check
          %p808 = pneg %p171
        $region58: #{tpu_custom_call.1} parent=55 // pred_check_branch
          %810 = sbr.rel (%p808) target = $region60
        $region59: #{tpu_custom_call.1} parent=55 // pred_region
          %s811 = sand.u32 %s156, 1
          %s812 = scalar_lea.sflag [#allocation5], %s811
          %s813 = sand.u32 %s156, 1
          %s814 = smul.addr %s813, 8
          %s815 = scalar_lea.vmem [#allocation10], %s814
          %816 = dma.done %s812, 128
        $region60: #{tpu_custom_call.1} parent=55 // pred_fallthru
          _
      $region56: #{tpu_custom_call.1} parent=5 // pred_fallthru
        _
    $region6: #{tpu_custom_call.1} parent=1 // loop_footer
      %s25 = sadd.s32 1, %s21
    $region7: #{tpu_custom_call.1} parent=1 // loop_footer_branch
      %20 = sbr.rel target = $region3
    $region8: #{tpu_custom_call.1} parent=1 // loop_exit
      _
    %817 = vsyncpa [#allocation4], 1
    %s818 = scalar_lea.sflag [#allocation4], 1
    %819 = vsyncpa %s818, 1
    %820 = vsyncpa [#allocation8], 1
    %s821 = scalar_lea.sflag [#allocation8], 1
    %822 = vsyncpa %s821, 1
    %823 = vsyncpa [#allocation5], 1
    %s824 = scalar_lea.sflag [#allocation5], 1
    %825 = vsyncpa %s824, 1
    %826 = vsyncpa [#allocation6], 1
    %s827 = scalar_lea.sflag [#allocation6], 1
    %828 = vsyncpa %s827, 1

</llo_original>
